<compile_context>
chip_gen: v5e
topology: v5e:2x2
jax: 0.10.0
libtpu: 0.0.40
codegen_flags: <defaults>
</compile_context>

<pallas_src>
import functools

import jax
import jax.numpy as jnp
from jax.experimental import pallas as pl
from jax.experimental.pallas import tpu as pltpu


def _round_up(x, m):
    return ((x + m - 1) // m) * m


def mlp_log_softmax_kernel(x_ref, w1_ref, b1_ref, w2_ref, b2_ref, o_ref):
    # x_ref:  (TB, D)   f32 (cast to matmul dtype in-kernel)
    # w1_ref: (D,  Hp)  bf16
    # b1_ref: (1,  Hp)  f32
    # w2_ref: (Hp, Cp)  bf16   (padded columns are exactly zero)
    # b2_ref: (1,  Cp)  f32    (padded columns are -1e30 -> fall out of softmax)
    # o_ref:  (TB, Cp)
    x = x_ref[...].astype(w1_ref.dtype)  # in-kernel cast; free on the VPU slot

    # fc1 (MXU, f32 accumulate) + bias + ReLU in f32
    h = jnp.dot(x, w1_ref[...], preferred_element_type=jnp.float32) + b1_ref[...]
    h = jnp.maximum(h, 0.0)

    # fc2 (MXU, f32 accumulate) + bias (padded classes get -1e30 via the bias)
    logits = jnp.dot(h.astype(w2_ref.dtype), w2_ref[...],
                     preferred_element_type=jnp.float32) + b2_ref[...]

    # Numerically stable log_softmax along dim=1 (full 128-lane vreg reductions).
    m = jnp.max(logits, axis=1, keepdims=True)
    shifted = logits - m
    lse = jnp.log(jnp.sum(jnp.exp(shifted), axis=1, keepdims=True))
    o_ref[...] = (shifted - lse).astype(o_ref.dtype)


def prepare_params(w1, b1, w2, b2, matmul_dtype=jnp.bfloat16):
    """Pad weights/biases to lane-dense widths once (reused across calls).

    Weights are (in_features, out_features) — transpose of PyTorch layout — so
    the kernel does plain (B,D)@(D,H) matmuls on the MXU. Padded hidden units
    produce ReLU(0)=0 and contribute nothing; padded class columns get a huge
    negative f32 bias so they never enter the softmax normalizer.
    """
    D, H = w1.shape
    C = w2.shape[1]
    Hp = _round_up(H, 128)
    Cp = _round_up(C, 128)
    w1p = jnp.pad(w1, ((0, 0), (0, Hp - H))).astype(matmul_dtype)
    b1p = jnp.pad(b1.reshape(1, H), ((0, 0), (0, Hp - H))).astype(jnp.float32)
    w2p = jnp.pad(w2, ((0, Hp - H), (0, Cp - C))).astype(matmul_dtype)
    b2p = jnp.pad(b2.reshape(1, C).astype(jnp.float32),
                  ((0, 0), (0, Cp - C)), constant_values=-1e30)
    return w1p, b1p, w2p, b2p


@functools.partial(jax.jit, static_argnames=("n_classes", "batch_tile", "out_dtype"))
def net_forward(x, w1p, b1p, w2p, b2p, *, n_classes, batch_tile=1024,
                out_dtype=jnp.float32):
    """x: (..., iSize, iSize) f32. Returns (B, n_classes) log-probabilities."""
    D = w1p.shape[0]
    Hp = w1p.shape[1]
    Cp = w2p.shape[1]
    x2d = x.reshape(-1, D).astype(jnp.float32)
    B = x2d.shape[0]

    if B <= batch_tile:
        # Small batch: single fully VMEM-resident invocation, no grid, no
        # pipeline machinery, no double-buffering.
        Bp = _round_up(max(B, 1), 8)  # fill sublanes
        xp = jnp.pad(x2d, ((0, Bp - B), (0, 0)))
        out = pl.pallas_call(
            mlp_log_softmax_kernel,
            out_shape=jax.ShapeDtypeStruct((Bp, Cp), out_dtype),
            in_specs=[pl.BlockSpec(memory_space=pltpu.MemorySpace.VMEM)] * 5,
            out_specs=pl.BlockSpec(memory_space=pltpu.MemorySpace.VMEM),
        )(xp, w1p, b1p, w2p, b2p)
    else:
        # Large batch: tile the batch axis. Cap the tile so the grid has at
        # least 2 steps (v7x megacore shards the "parallel" axis over 2 TCs).
        TB = min(batch_tile, _round_up(-(-B // 2), 8))
        Bp = _round_up(B, TB)
        xp = jnp.pad(x2d, ((0, Bp - B), (0, 0)))
        out = pl.pallas_call(
            mlp_log_softmax_kernel,
            out_shape=jax.ShapeDtypeStruct((Bp, Cp), out_dtype),
            grid=(Bp // TB,),
            in_specs=[
                pl.BlockSpec((TB, D), lambda i: (i, 0)),
                pl.BlockSpec((D, Hp), lambda i: (0, 0)),   # weights VMEM-resident
                pl.BlockSpec((1, Hp), lambda i: (0, 0)),
                pl.BlockSpec((Hp, Cp), lambda i: (0, 0)),
                pl.BlockSpec((1, Cp), lambda i: (0, 0)),
            ],
            out_specs=pl.BlockSpec((TB, Cp), lambda i: (i, 0)),
            compiler_params=pltpu.CompilerParams(
                dimension_semantics=("parallel",)),  # megacore on v7x
        )(xp, w1p, b1p, w2p, b2p)

    # Crop stays inside the same jit as the pallas_call -> fuses, no extra pass.
    return out[:B, :n_classes]


def init_params(key, iSize, Neuron, num):
    """Deterministic PyTorch-style (uniform +/- 1/sqrt(fan_in)) init."""
    D = iSize * iSize
    k1, k2, k3, k4 = jax.random.split(key, 4)
    bound1 = 1.0 / jnp.sqrt(D)
    bound2 = 1.0 / jnp.sqrt(Neuron)
    w1 = jax.random.uniform(k1, (D, Neuron), jnp.float32, -bound1, bound1)
    b1 = jax.random.uniform(k2, (1, Neuron), jnp.float32, -bound1, bound1)
    w2 = jax.random.uniform(k3, (Neuron, num), jnp.float32, -bound2, bound2)
    b2 = jax.random.uniform(k4, (1, num), jnp.float32, -bound2, bound2)
    return w1, b1, w2, b2


def reference_forward(x, w1, b1, w2, b2, *, iSize):
    x2d = x.reshape(-1, iSize * iSize).astype(jnp.float32)
    h = jnp.maximum(x2d @ w1 + b1, 0.0)
    logits = h @ w2 + b2
    return jax.nn.log_softmax(logits, axis=1)


if __name__ == "__main__":
    # Shapes consistent with the module: Net(num=10, inputSize=16, Neuron=32)
    num, iSize, Neuron = 10, 16, 32

    key = jax.random.PRNGKey(0)
    kx, kp, kx2 = jax.random.split(key, 3)
    w1, b1, w2, b2 = init_params(kp, iSize, Neuron, num)
    w1p, b1p, w2p, b2p = prepare_params(w1, b1, w2, b2)  # pad/cast once

    # Small batch -> gridless fully VMEM-resident path.
    batch = 2
    x = jax.random.normal(kx, (batch, iSize, iSize), jnp.float32)
    out = jax.block_until_ready(
        net_forward(x, w1p, b1p, w2p, b2p, n_classes=num))
    ref = reference_forward(x, w1, b1, w2, b2, iSize=iSize)
    assert out.shape == (batch, num)
    assert jnp.allclose(out, ref, atol=2e-2, rtol=2e-2), \
        "mismatch vs reference (small batch)"

    # Larger batch, tile forced small to exercise the batch-tiled grid path
    # (default batch_tile=1024 is the performant production setting).
    batch2 = 300
    x2 = jax.random.normal(kx2, (batch2, iSize, iSize), jnp.float32)
    out2 = jax.block_until_ready(
        net_forward(x2, w1p, b1p, w2p, b2p, n_classes=num, batch_tile=128))
    ref2 = reference_forward(x2, w1, b1, w2, b2, iSize=iSize)
    assert out2.shape == (batch2, num)
    assert jnp.allclose(out2, ref2, atol=2e-2, rtol=2e-2), \
        "mismatch vs reference (tiled batch)"

    print("KERNEL_OK")
</pallas_src>

<mosaic_0001>
module attributes {stable_mosaic.version = 11 : i64} {
  func.func @mlp_log_softmax_kernel(%arg0: memref<8x256xf32, #tpu.memory_space<vmem>>, %arg1: memref<256x128xbf16, #tpu.memory_space<vmem>>, %arg2: memref<1x128xf32, #tpu.memory_space<vmem>>, %arg3: memref<128x128xbf16, #tpu.memory_space<vmem>>, %arg4: memref<1x128xf32, #tpu.memory_space<vmem>>, %arg5: memref<8x128xf32, #tpu.memory_space<vmem>>) attributes {dimension_semantics = [], scalar_prefetch = 0 : i64, scratch_operands = 0 : i64, tpu.core_type = #tpu.core_type<tc>} {
    %c0 = arith.constant 0 : index
    %c0_0 = arith.constant 0 : index
    %0 = vector.load %arg0[%c0, %c0_0] : memref<8x256xf32, #tpu.memory_space<vmem>>, vector<8x256xf32>
    %1 = arith.truncf %0 : vector<8x256xf32> to vector<8x256xbf16>
    %c0_1 = arith.constant 0 : index
    %c0_2 = arith.constant 0 : index
    %2 = vector.load %arg1[%c0_1, %c0_2] : memref<256x128xbf16, #tpu.memory_space<vmem>>, vector<256x128xbf16>
    %cst = arith.constant dense<0.000000e+00> : vector<8x128xf32>
    %3 = tpu.matmul %1, %2, %cst {dimension_numbers = #tpu.dot_dimension_numbers<[1], [0], [0], [1], [0, 0, 1, 1], [], []>} : vector<8x256xbf16>, vector<256x128xbf16>, vector<8x128xf32> -> vector<8x128xf32>
    %c0_3 = arith.constant 0 : index
    %c0_4 = arith.constant 0 : index
    %4 = vector.load %arg2[%c0_3, %c0_4] : memref<1x128xf32, #tpu.memory_space<vmem>>, vector<1x128xf32>
    %5 = vector.broadcast %4 : vector<1x128xf32> to vector<8x128xf32>
    %6 = arith.addf %3, %5 : vector<8x128xf32>
    %cst_5 = arith.constant 0.000000e+00 : f32
    %7 = vector.broadcast %cst_5 : f32 to vector<8x128xf32>
    %8 = arith.maximumf %6, %7 : vector<8x128xf32>
    %9 = arith.truncf %8 : vector<8x128xf32> to vector<8x128xbf16>
    %c0_6 = arith.constant 0 : index
    %c0_7 = arith.constant 0 : index
    %10 = vector.load %arg3[%c0_6, %c0_7] : memref<128x128xbf16, #tpu.memory_space<vmem>>, vector<128x128xbf16>
    %cst_8 = arith.constant dense<0.000000e+00> : vector<8x128xf32>
    %11 = tpu.matmul %9, %10, %cst_8 {dimension_numbers = #tpu.dot_dimension_numbers<[1], [0], [0], [1], [0, 0, 1, 1], [], []>} : vector<8x128xbf16>, vector<128x128xbf16>, vector<8x128xf32> -> vector<8x128xf32>
    %c0_9 = arith.constant 0 : index
    %c0_10 = arith.constant 0 : index
    %12 = vector.load %arg4[%c0_9, %c0_10] : memref<1x128xf32, #tpu.memory_space<vmem>>, vector<1x128xf32>
    %13 = vector.broadcast %12 : vector<1x128xf32> to vector<8x128xf32>
    %14 = arith.addf %11, %13 : vector<8x128xf32>
    %cst_11 = arith.constant dense<0xFF800000> : vector<8xf32>
    %15 = vector.multi_reduction <maximumf>, %14, %cst_11 [1] : vector<8x128xf32> to vector<8xf32>
    %16 = vector.shape_cast %15 : vector<8xf32> to vector<8x1xf32>
    %17 = vector.broadcast %16 : vector<8x1xf32> to vector<8x128xf32>
    %18 = arith.subf %14, %17 : vector<8x128xf32>
    %19 = math.exp %18 : vector<8x128xf32>
    %cst_12 = arith.constant dense<0.000000e+00> : vector<8xf32>
    %20 = vector.multi_reduction <add>, %19, %cst_12 [1] : vector<8x128xf32> to vector<8xf32>
    %21 = vector.shape_cast %20 : vector<8xf32> to vector<8x1xf32>
    %22 = math.log %21 : vector<8x1xf32>
    %23 = vector.broadcast %22 : vector<8x1xf32> to vector<8x128xf32>
    %24 = arith.subf %18, %23 : vector<8x128xf32>
    %c0_13 = arith.constant 0 : index
    %c0_14 = arith.constant 0 : index
    %25 = vector.load %arg5[%c0_13, %c0_14] : memref<8x128xf32, #tpu.memory_space<vmem>>, vector<8x128xf32>
    tpu.vector_store %arg5[%c0_13, %c0_14], %24 {strides = array<i32>} : memref<8x128xf32, #tpu.memory_space<vmem>>, vector<8x128xf32>,
    return
  }
}

</mosaic_0001>

<llo_original>
// kernel: net_forward.1
$region0: #{net_forward.1}
  #allocation0 [shape = 'u32[]', space=smem, size = 0x4, offset = 0x4, fixed_abs, tag = 'smem constant byte address 0x4 - core index']
  #allocation1 [shape = 'u32[72,128]{1,0:T(1,128)}', space=vmem, size = 0x9000, scoped, tag = 'internal scratch']
  %s0 = inlined_call_operand.vmem [shape: f32[8,256], index: 0, kind: input, shape index: {}]
  %s1 = inlined_call_operand.hbm [shape: bf16[256,128], index: 1, kind: input, shape index: {}]
  %s2 = inlined_call_operand.vmem [shape: f32[1,128], index: 2, kind: input, shape index: {}]
  %s3 = inlined_call_operand.hbm [shape: bf16[128,128], index: 3, kind: input, shape index: {}]
  %s4 = inlined_call_operand.vmem [shape: f32[1,128], index: 4, kind: input, shape index: {}]
  %s5 = inlined_call_operand.vmem [shape: f32[8,128], index: 5, kind: output, shape index: {}]
  %s6 = sld [smem:[#allocation0]]
  $region38: #{net_forward.1} parent=0
    _
  %s8 = ssub.s32 1, %s6
  %s9 = scalar_select 0, %s8, %s6
  $region1: #{net_forward.1} parent=0
    #allocation2 [shape = 'u8[65536]{0}', space=vmem, size = 0x10000, scoped, tag = 'input window, operand 1, single buffered']
    #allocation3 [shape = 's32[1]{0}', space=sflag, size = 0x4, scoped, tag = 'scoped memory for net_forward.1']
    #allocation4 [shape = 'u8[32768]{0}', space=vmem, size = 0x8000, scoped, tag = 'input window, operand 3, single buffered']
    #allocation5 [shape = 's32[1]{0}', space=sflag, size = 0x4, scoped, tag = 'scoped memory for net_forward.1']
    %10 = vsyncpa [#allocation3], 0
    %11 = vsyncpa [#allocation5], 0
    // Predicated region
    $region2: #{net_forward.1} parent=1 // pred_check
      _
    $region3: #{net_forward.1} parent=1 // pred_check_branch
      %13 = sbr.rel (0) target = $region5
    $region4: #{net_forward.1} parent=1 // pred_region
      _
    $region5: #{net_forward.1} parent=1 // pred_fallthru
      _
    // Predicated region
    $region6: #{net_forward.1} parent=1 // pred_check
      _
    $region7: #{net_forward.1} parent=1 // pred_check_branch
      %15 = sbr.rel (0) target = $region9
    $region8: #{net_forward.1} parent=1 // pred_region
      %17 = vsyncadd [#allocation3], 0
      %s18 = sshll.u32 %s1, 4
      %s19 = int_to_ptr.hbm [resolvable:$true] %s18
      %s20 = sshll.u32 [#allocation2], 4
      %s21 = int_to_ptr.vmem [resolvable:$true] %s20
      %26 = dma.hbm_to_vmem [thread:$0]  %s19, 2048, %s21, [#allocation3], 64, 64, 4
    $region9: #{net_forward.1} parent=1 // pred_fallthru
      _
    // Predicated region
    $region10: #{net_forward.1} parent=1 // pred_check
      _
    $region11: #{net_forward.1} parent=1 // pred_check_branch
      %28 = sbr.rel (0) target = $region13
    $region12: #{net_forward.1} parent=1 // pred_region
      _
    $region13: #{net_forward.1} parent=1 // pred_fallthru
      _
    // Predicated region
    $region14: #{net_forward.1} parent=1 // pred_check
      _
    $region15: #{net_forward.1} parent=1 // pred_check_branch
      %30 = sbr.rel (0) target = $region17
    $region16: #{net_forward.1} parent=1 // pred_region
      %32 = vsyncadd [#allocation5], 0
      %s33 = sshll.u32 %s3, 4
      %s34 = int_to_ptr.hbm [resolvable:$true] %s33
      %s35 = sshll.u32 [#allocation4], 4
      %s36 = int_to_ptr.vmem [resolvable:$true] %s35
      %41 = dma.hbm_to_vmem [thread:$0]  %s34, 1024, %s36, [#allocation5], 64, 64, 4
    $region17: #{net_forward.1} parent=1 // pred_fallthru
      _
    // Predicated region
    $region18: #{net_forward.1} parent=1 // pred_check
      _
    $region19: #{net_forward.1} parent=1 // pred_check_branch
      %43 = sbr.rel (0) target = $region21
    $region20: #{net_forward.1} parent=1 // pred_region
      _
    $region21: #{net_forward.1} parent=1 // pred_fallthru
      _
    // Predicated region
    $region22: #{net_forward.1} parent=1 // pred_check
      _
    $region23: #{net_forward.1} parent=1 // pred_check_branch
      %45 = sbr.rel (0) target = $region25
    $region24: #{net_forward.1} parent=1 // pred_region
      %47 = dma.done [#allocation3], 2048
    $region25: #{net_forward.1} parent=1 // pred_fallthru
      _
    // Predicated region
    $region26: #{net_forward.1} parent=1 // pred_check
      _
    $region27: #{net_forward.1} parent=1 // pred_check_branch
      %49 = sbr.rel (0) target = $region29
    $region28: #{net_forward.1} parent=1 // pred_region
      %51 = dma.done [#allocation5], 1024
    $region29: #{net_forward.1} parent=1 // pred_fallthru
      _
    %v52 = vld [vmem:[%s0] sm:$0xff]
    %v53 = vld [vmem:[%s0 + $0x8] sm:$0xff]
    %v54 = vpack.c.bf16 %v52, %v52
    %v55 = vpack.c.bf16 %v53, %v53
    %v56 = vld [vmem:[#allocation2] sm:$0xf]
    %v57 = vld [vmem:[#allocation2 + $0x4] sm:$0xf]
    %v58 = vld [vmem:[#allocation2 + $0x8] sm:$0xf]
    %v59 = vld [vmem:[#allocation2 + $0xc] sm:$0xf]
    %v60 = vld [vmem:[#allocation2 + $0x10] sm:$0xf]
    %v61 = vld [vmem:[#allocation2 + $0x14] sm:$0xf]
    %v62 = vld [vmem:[#allocation2 + $0x18] sm:$0xf]
    %v63 = vld [vmem:[#allocation2 + $0x1c] sm:$0xf]
    %v64 = vld [vmem:[#allocation2 + $0x20] sm:$0xf]
    %v65 = vld [vmem:[#allocation2 + $0x24] sm:$0xf]
    %v66 = vld [vmem:[#allocation2 + $0x28] sm:$0xf]
    %v67 = vld [vmem:[#allocation2 + $0x2c] sm:$0xf]
    %v68 = vld [vmem:[#allocation2 + $0x30] sm:$0xf]
    %v69 = vld [vmem:[#allocation2 + $0x34] sm:$0xf]
    %v70 = vld [vmem:[#allocation2 + $0x38] sm:$0xf]
    %v71 = vld [vmem:[#allocation2 + $0x3c] sm:$0xf]
    %v72 = vld [vmem:[#allocation2 + $0x40] sm:$0xf]
    %v73 = vld [vmem:[#allocation2 + $0x44] sm:$0xf]
    %v74 = vld [vmem:[#allocation2 + $0x48] sm:$0xf]
    %v75 = vld [vmem:[#allocation2 + $0x4c] sm:$0xf]
    %v76 = vld [vmem:[#allocation2 + $0x50] sm:$0xf]
    %v77 = vld [vmem:[#allocation2 + $0x54] sm:$0xf]
    %v78 = vld [vmem:[#allocation2 + $0x58] sm:$0xf]
    %v79 = vld [vmem:[#allocation2 + $0x5c] sm:$0xf]
    %v80 = vld [vmem:[#allocation2 + $0x60] sm:$0xf]
    %v81 = vld [vmem:[#allocation2 + $0x64] sm:$0xf]
    %v82 = vld [vmem:[#allocation2 + $0x68] sm:$0xf]
    %v83 = vld [vmem:[#allocation2 + $0x6c] sm:$0xf]
    %v84 = vld [vmem:[#allocation2 + $0x70] sm:$0xf]
    %v85 = vld [vmem:[#allocation2 + $0x74] sm:$0xf]
    %v86 = vld [vmem:[#allocation2 + $0x78] sm:$0xf]
    %v87 = vld [vmem:[#allocation2 + $0x7c] sm:$0xf]
    %v88 = vld [vmem:[%s2] sm:$0x1]
    %v90 = vperm.slane %v88, 0
    %v124 = vunpack.c.l.b16 %v56
    %v125 = vunpack.c.l.b16 %v57
    %v126 = vunpack.c.l.b16 %v58
    %v127 = vunpack.c.l.b16 %v59
    %v128 = vunpack.c.l.b16 %v60
    %v129 = vunpack.c.l.b16 %v61
    %v130 = vunpack.c.l.b16 %v62
    %v131 = vunpack.c.l.b16 %v63
    %v132 = vunpack.c.l.b16 %v64
    %v133 = vunpack.c.l.b16 %v65
    %v134 = vunpack.c.l.b16 %v66
    %v135 = vunpack.c.l.b16 %v67
    %v136 = vunpack.c.l.b16 %v68
    %v137 = vunpack.c.l.b16 %v69
    %v138 = vunpack.c.l.b16 %v70
    %v139 = vunpack.c.l.b16 %v71
    %v140 = vunpack.c.l.b16 %v72
    %v141 = vunpack.c.l.b16 %v73
    %v142 = vunpack.c.l.b16 %v74
    %v143 = vunpack.c.l.b16 %v75
    %v144 = vunpack.c.l.b16 %v76
    %v145 = vunpack.c.l.b16 %v77
    %v146 = vunpack.c.l.b16 %v78
    %v147 = vunpack.c.l.b16 %v79
    %v148 = vunpack.c.l.b16 %v80
    %v149 = vunpack.c.l.b16 %v81
    %v150 = vunpack.c.l.b16 %v82
    %v151 = vunpack.c.l.b16 %v83
    %v152 = vunpack.c.l.b16 %v84
    %v153 = vunpack.c.l.b16 %v85
    %v154 = vunpack.c.l.b16 %v86
    %v155 = vunpack.c.l.b16 %v87
    %v156 = vpack.c.b16 %v125, %v124
    %v157 = vpack.c.b16 %v127, %v126
    %v158 = vpack.c.b16 %v129, %v128
    %v159 = vpack.c.b16 %v131, %v130
    %v160 = vpack.c.b16 %v133, %v132
    %v161 = vpack.c.b16 %v135, %v134
    %v162 = vpack.c.b16 %v137, %v136
    %v163 = vpack.c.b16 %v139, %v138
    %v164 = vpack.c.b16 %v141, %v140
    %v165 = vpack.c.b16 %v143, %v142
    %v166 = vpack.c.b16 %v145, %v144
    %v167 = vpack.c.b16 %v147, %v146
    %v168 = vpack.c.b16 %v149, %v148
    %v169 = vpack.c.b16 %v151, %v150
    %v170 = vpack.c.b16 %v153, %v152
    %v171 = vpack.c.b16 %v155, %v154
    %188 = vmatpush.bf16.msra.mxu0 %v163
    %189 = vmatpush.bf16.msra.mxu0 %v162
    %190 = vmatpush.bf16.msra.mxu0 %v161
    %191 = vmatpush.bf16.msra.mxu0 %v160
    %192 = vmatpush.bf16.msra.mxu0 %v159
    %193 = vmatpush.bf16.msra.mxu0 %v158
    %194 = vmatpush.bf16.msra.mxu0 %v157
    %195 = vmatpush.bf16.msra.mxu0 %v156
    %196 = vmatmul.bf16.gmra.mxu0 %v54
    %v197 = vpop.f32.mrf.mxu0
    %v198 = vadd.f32 %v90, %v197
    %v199 = vpop.f32.mrf.mxu0
    %200 = vdwg.mxu0
    %201 = vmatpush.bf16.msra.mxu0 %v171
    %202 = vmatpush.bf16.msra.mxu0 %v170
    %203 = vmatpush.bf16.msra.mxu0 %v169
    %204 = vmatpush.bf16.msra.mxu0 %v168
    %205 = vmatpush.bf16.msra.mxu0 %v167
    %206 = vmatpush.bf16.msra.mxu0 %v166
    %207 = vmatpush.bf16.msra.mxu0 %v165
    %208 = vmatpush.bf16.msra.mxu0 %v164
    %209 = vmatmul.bf16.gmra.mxu0 %v55
    %v210 = vpop.f32.mrf.mxu0
    %v211 = vadd.f32 %v198, %v210
    %v212 = vpop.f32.mrf.mxu0
    %213 = vdwg.mxu0
    %v214 = vmax.f32 %v211, 0.0
    %v215 = vpack.c.bf16 %v214, %v214
    %v216 = vld [vmem:[#allocation4] sm:$0xf]
    %v217 = vld [vmem:[#allocation4 + $0x4] sm:$0xf]
    %v218 = vld [vmem:[#allocation4 + $0x8] sm:$0xf]
    %v219 = vld [vmem:[#allocation4 + $0xc] sm:$0xf]
    %v220 = vld [vmem:[#allocation4 + $0x10] sm:$0xf]
    %v221 = vld [vmem:[#allocation4 + $0x14] sm:$0xf]
    %v222 = vld [vmem:[#allocation4 + $0x18] sm:$0xf]
    %v223 = vld [vmem:[#allocation4 + $0x1c] sm:$0xf]
    %v224 = vld [vmem:[#allocation4 + $0x20] sm:$0xf]
    %v225 = vld [vmem:[#allocation4 + $0x24] sm:$0xf]
    %v226 = vld [vmem:[#allocation4 + $0x28] sm:$0xf]
    %v227 = vld [vmem:[#allocation4 + $0x2c] sm:$0xf]
    %v228 = vld [vmem:[#allocation4 + $0x30] sm:$0xf]
    %v229 = vld [vmem:[#allocation4 + $0x34] sm:$0xf]
    %v230 = vld [vmem:[#allocation4 + $0x38] sm:$0xf]
    %v231 = vld [vmem:[#allocation4 + $0x3c] sm:$0xf]
    %v232 = vld [vmem:[%s4] sm:$0x1]
    %v234 = vperm.slane %v232, 0
    %v252 = vunpack.c.l.b16 %v216
    %v253 = vunpack.c.l.b16 %v217
    %v254 = vunpack.c.l.b16 %v218
    %v255 = vunpack.c.l.b16 %v219
    %v256 = vunpack.c.l.b16 %v220
    %v257 = vunpack.c.l.b16 %v221
    %v258 = vunpack.c.l.b16 %v222
    %v259 = vunpack.c.l.b16 %v223
    %v260 = vunpack.c.l.b16 %v224
    %v261 = vunpack.c.l.b16 %v225
    %v262 = vunpack.c.l.b16 %v226
    %v263 = vunpack.c.l.b16 %v227
    %v264 = vunpack.c.l.b16 %v228
    %v265 = vunpack.c.l.b16 %v229
    %v266 = vunpack.c.l.b16 %v230
    %v267 = vunpack.c.l.b16 %v231
    %v268 = vpack.c.b16 %v253, %v252
    %v269 = vpack.c.b16 %v255, %v254
    %v270 = vpack.c.b16 %v257, %v256
    %v271 = vpack.c.b16 %v259, %v258
    %v272 = vpack.c.b16 %v261, %v260
    %v273 = vpack.c.b16 %v263, %v262
    %v274 = vpack.c.b16 %v265, %v264
    %v275 = vpack.c.b16 %v267, %v266
    %284 = vmatpush.bf16.msra.mxu0 %v275
    %285 = vmatpush.bf16.msra.mxu0 %v274
    %286 = vmatpush.bf16.msra.mxu0 %v273
    %287 = vmatpush.bf16.msra.mxu0 %v272
    %288 = vmatpush.bf16.msra.mxu0 %v271
    %289 = vmatpush.bf16.msra.mxu0 %v270
    %290 = vmatpush.bf16.msra.mxu0 %v269
    %291 = vmatpush.bf16.msra.mxu0 %v268
    %292 = vmatmul.bf16.gmra.mxu0 %v215
    %v293 = vpop.f32.mrf.mxu0
    %v294 = vadd.f32 %v234, %v293
    %v295 = vpop.f32.mrf.mxu0
    %296 = vdwg.mxu0
    %297 = vmax.xlane.f32.xlu0 %v294
    %v298 = vpop.xlane.xlu0 %297
    %v299 = vsub.f32 %v294, %v298
    %v300 = vmul.f32 %v299, 1.442695
    %v301 = vpow.pop %v300
    %302 = vadd.xlane.f32.xlu0 %v301
    %v303 = vpop.xlane.xlu0 %302
    %v304 = vlog2.pop %v303
    %v305 = vmul.f32 %v304, 0.6931472
    %v306 = vsub.f32 %v299, %v305
    %307 = vst [vmem:[%s5] sm:$0xff] %v306
    // Predicated region
    $region30: #{net_forward.1} parent=1 // pred_check
      _
    $region31: #{net_forward.1} parent=1 // pred_check_branch
      %309 = sbr.rel (0) target = $region33
    $region32: #{net_forward.1} parent=1 // pred_region
      _
    $region33: #{net_forward.1} parent=1 // pred_fallthru
      _
    // Predicated region
    $region34: #{net_forward.1} parent=1 // pred_check
      _
    $region35: #{net_forward.1} parent=1 // pred_check_branch
      %311 = sbr.rel (0) target = $region37
    $region36: #{net_forward.1} parent=1 // pred_region
      _
    $region37: #{net_forward.1} parent=1 // pred_fallthru
      _
    %312 = vsyncpa [#allocation3], 1
    %313 = vsyncpa [#allocation5], 1

</llo_original>
